<compile_context>
chip_gen: v6e
topology: v6e:2x2x1
jax: 0.10.0
libtpu: 0.0.40
codegen_flags: <defaults>
</compile_context>

<pallas_src>
import jax
import jax.numpy as jnp
from jax.experimental import pallas as pl
from jax.experimental.pallas import tpu as pltpu

BN_EPS = 1e-5
F_PAD = 128          # lane-dense padded feature width for every layer


# --------------------------------------------------------------------------
# Kernels
# --------------------------------------------------------------------------
def gcn_layer_kernel(a_ref, h_ref, w_ref, p_ref, z_ref, stats_ref, acc_ref):
    """One GCN layer: z = (A_hat @ act_in(H)) @ W, plus per-row-block BN stats.

    act_in is the *previous* layer's BatchNorm+PReLU folded into a single
    scale/shift FMA + PReLU (identity for layer 1).  Grid = (row blocks,
    K blocks); row axis parallel, K is the arbitrary reduction axis.
    """
    k = pl.program_id(1)
    nk = pl.num_programs(1)

    @pl.when(k == 0)
    def _():
        acc_ref[...] = jnp.zeros_like(acc_ref)
        stats_ref[...] = jnp.zeros_like(stats_ref)

    p = p_ref[...]                                # (8, F_PAD) packed params
    scale_in = p[0:1, :]
    shift_in = p[1:2, :]
    alpha_in = p[2:3, 0:1]

    h = h_ref[...] * scale_in + shift_in          # BN of previous layer (f32)
    h = jnp.where(h > 0, h, alpha_in * h)         # PReLU (identity in layer 1)

    acc_ref[...] += jnp.dot(a_ref[...], h.astype(jnp.bfloat16),
                            preferred_element_type=jnp.float32)

    @pl.when(k == nk - 1)
    def _():
        z = jnp.dot(acc_ref[...].astype(jnp.bfloat16), w_ref[...],
                    preferred_element_type=jnp.float32)     # (TM, F_PAD)
        z_ref[...] = z
        stats_ref[0:1, :] = jnp.sum(z, axis=0, keepdims=True)
        stats_ref[1:2, :] = jnp.sum(z * z, axis=0, keepdims=True)


def bn_prelu_kernel(z_ref, p_ref, o_ref):
    """Final BatchNorm + PReLU epilogue; lane-dense bf16 store."""
    p = p_ref[...]
    h = z_ref[...] * p[0:1, :] + p[1:2, :]
    h = jnp.where(h > 0, h, p[2:3, 0:1] * h)
    o_ref[...] = h.astype(o_ref.dtype)


# --------------------------------------------------------------------------
# Wrapper
# --------------------------------------------------------------------------
def _pack_params(scale, shift, alpha):
    p = jnp.zeros((8, F_PAD), jnp.float32)
    p = p.at[0, :].set(scale)
    p = p.at[1, :].set(shift)
    p = p.at[2, 0].set(alpha)
    return p


def _pad_cols(v, f):
    return jnp.zeros((F_PAD,), jnp.float32).at[:f].set(v)


def encoder_forward(a_hat, x, params, layer_config, *, tm=128, tk=128):
    f0, f1, f2 = layer_config
    n = x.shape[0]
    tm = min(tm, n)
    tk = min(tk, n)
    assert n % tm == 0 and n % tk == 0, "demo assumes N divisible by the tile"
    n_i, n_k = n // tm, n // tk

    # bf16 MXU operands (f32 accumulation inside the kernel); 128-lane padding.
    a_bf = a_hat.astype(jnp.bfloat16)
    x_pad = jnp.zeros((n, F_PAD), jnp.float32).at[:, :f0].set(x)
    w1 = jnp.zeros((F_PAD, F_PAD), jnp.bfloat16).at[:f0, :f1].set(
        params["w1"].astype(jnp.bfloat16))
    w2 = jnp.zeros((F_PAD, F_PAD), jnp.bfloat16).at[:f1, :f2].set(
        params["w2"].astype(jnp.bfloat16))
    # NOTE: GCN biases b1/b2 are intentionally NOT loaded into the kernel:
    # a per-column bias directly followed by training-mode BatchNorm cancels
    # exactly, so they are dead work (reference includes them and still matches).

    # Explicit scoped-VMEM limit from the real (double-buffered) tile footprint.
    layer_bytes = (2 * tm * tk * 2 + 2 * tk * F_PAD * 4 + 2 * F_PAD * F_PAD * 2
                   + 2 * 8 * F_PAD * 4 + 2 * tm * F_PAD * 4 + 2 * 8 * F_PAD * 4
                   + tm * F_PAD * 4)
    vmem_layer = int(max(4 << 20, min(100 << 20, 2 * layer_bytes)))

    def gcn_layer(h_in, w, p_in):
        return pl.pallas_call(
            gcn_layer_kernel,
            grid=(n_i, n_k),
            in_specs=[
                pl.BlockSpec((tm, tk), lambda i, k: (i, k)),         # A_hat tile
                pl.BlockSpec((tk, F_PAD), lambda i, k: (k, 0)),      # H (raw z_in)
                pl.BlockSpec((F_PAD, F_PAD), lambda i, k: (0, 0)),   # W
                pl.BlockSpec((8, F_PAD), lambda i, k: (0, 0)),       # packed params
            ],
            out_specs=[
                pl.BlockSpec((tm, F_PAD), lambda i, k: (i, 0)),      # Z row block
                pl.BlockSpec((8, F_PAD), lambda i, k: (i, 0)),       # stats block
            ],
            out_shape=[
                jax.ShapeDtypeStruct((n, F_PAD), jnp.float32),
                jax.ShapeDtypeStruct((n_i * 8, F_PAD), jnp.float32),
            ],
            scratch_shapes=[pltpu.VMEM((tm, F_PAD), jnp.float32)],
            compiler_params=pltpu.CompilerParams(
                dimension_semantics=("parallel", "arbitrary"),
                vmem_limit_bytes=vmem_layer),
        )(a_bf, h_in, w, p_in)

    def bn_scale_shift(stats, gamma, beta):
        st = stats.reshape(n_i, 8, F_PAD)
        s = jnp.sum(st[:, 0, :], axis=0)
        ss = jnp.sum(st[:, 1, :], axis=0)
        mean = s / n
        var = jnp.maximum(ss / n - mean * mean, 0.0)   # guard f32 cancellation
        scale = gamma * jax.lax.rsqrt(var + BN_EPS)
        shift = beta - mean * scale
        return scale, shift

    # ---- layer 1: GCNConv (input activation = identity) -------------------
    p_id = _pack_params(jnp.ones((F_PAD,), jnp.float32),
                        jnp.zeros((F_PAD,), jnp.float32), 1.0)
    z1, st1 = gcn_layer(x_pad, w1, p_id)
    sc1, sh1 = bn_scale_shift(st1, _pad_cols(params["g1"], f1),
                              _pad_cols(params["be1"], f1))

    # ---- layer 2: BN1 + PReLU1 fused into the K-block loads ---------------
    p1 = _pack_params(sc1, sh1, params["al1"])
    z2, st2 = gcn_layer(z1, w2, p1)
    sc2, sh2 = bn_scale_shift(st2, _pad_cols(params["g2"], f2),
                              _pad_cols(params["be2"], f2))

    # ---- epilogue: BN2 + PReLU2, lane-dense bf16 store ---------------------
    p2 = _pack_params(sc2, sh2, params["al2"])
    epi_bytes = 2 * tm * F_PAD * 4 + 2 * 8 * F_PAD * 4 + 2 * tm * F_PAD * 2
    out_pad = pl.pallas_call(
        bn_prelu_kernel,
        grid=(n_i,),
        in_specs=[pl.BlockSpec((tm, F_PAD), lambda i: (i, 0)),
                  pl.BlockSpec((8, F_PAD), lambda i: (0, 0))],
        out_specs=pl.BlockSpec((tm, F_PAD), lambda i: (i, 0)),
        out_shape=jax.ShapeDtypeStruct((n, F_PAD), jnp.bfloat16),
        compiler_params=pltpu.CompilerParams(
            dimension_semantics=("parallel",),
            vmem_limit_bytes=int(max(4 << 20, 2 * epi_bytes))),
    )(z2, p2)

    return out_pad[:, :f2]


# --------------------------------------------------------------------------
# Plain-JAX reference (mirrors the kernel's mixed-precision scheme; keeps the
# GCN biases to demonstrate that they cancel under training-mode BatchNorm).
# --------------------------------------------------------------------------
def encoder_reference(a_hat, x, params):
    a = a_hat.astype(jnp.bfloat16)

    def layer(h, w, b, g, be, al):
        ah = jnp.dot(a, h.astype(jnp.bfloat16), preferred_element_type=jnp.float32)
        z = jnp.dot(ah.astype(jnp.bfloat16), w.astype(jnp.bfloat16),
                    preferred_element_type=jnp.float32) + b
        mean = jnp.mean(z, axis=0, keepdims=True)
        var = jnp.mean((z - mean) ** 2, axis=0, keepdims=True)
        zn = (z - mean) * jax.lax.rsqrt(var + BN_EPS) * g + be
        return jnp.where(zn > 0, zn, al * zn)

    h1 = layer(x, params["w1"], params["b1"], params["g1"],
               params["be1"], params["al1"])
    h2 = layer(h1, params["w2"], params["b2"], params["g2"],
               params["be2"], params["al2"])
    return h2


def build_norm_adj(edge_index, edge_weight, num_nodes):
    """Dense D^-1/2 (A + I) D^-1/2  (PyG GCNConv default normalization)."""
    src, dst = edge_index[0], edge_index[1]
    if edge_weight is None:
        edge_weight = jnp.ones(src.shape[0], dtype=jnp.float32)
    A = jnp.zeros((num_nodes, num_nodes), jnp.float32).at[dst, src].add(edge_weight)
    A = A + jnp.eye(num_nodes, dtype=jnp.float32)          # self loops (w = 1)
    deg = A.sum(axis=1)
    dinv = jnp.where(deg > 0, 1.0 / jnp.sqrt(deg), 0.0)
    return dinv[:, None] * A * dinv[None, :]


def init_params(key, layer_config):
    f0, f1, f2 = layer_config
    ks = jax.random.split(key, 8)

    def glorot(k, fan_in, fan_out):
        lim = (6.0 / (fan_in + fan_out)) ** 0.5
        return jax.random.uniform(k, (fan_in, fan_out), jnp.float32, -lim, lim)

    return {
        # GCNConv 1 (bias is nonzero on purpose: it must cancel under BN)
        "w1": glorot(ks[0], f0, f1),
        "b1": 0.5 * jax.random.normal(ks[1], (f1,), jnp.float32),
        # BatchNorm1d 1 (training-mode batch stats)
        "g1": 1.0 + 0.1 * jax.random.normal(ks[2], (f1,), jnp.float32),
        "be1": 0.1 * jax.random.normal(ks[3], (f1,), jnp.float32),
        # PReLU 1 (default init 0.25)
        "al1": jnp.float32(0.25),
        # GCNConv 2
        "w2": glorot(ks[4], f1, f2),
        "b2": 0.5 * jax.random.normal(ks[5], (f2,), jnp.float32),
        # BatchNorm1d 2
        "g2": 1.0 + 0.1 * jax.random.normal(ks[6], (f2,), jnp.float32),
        "be2": 0.1 * jax.random.normal(ks[7], (f2,), jnp.float32),
        # PReLU 2
        "al2": jnp.float32(0.25),
    }


if __name__ == "__main__":
    key = jax.random.PRNGKey(0)
    k_x, k_p = jax.random.split(key)

    N = 256                      # nodes (2 row blocks x 2 K blocks of 128)
    layer_config = [8, 16, 32]   # in_feats, hidden, out_feats

    # node features
    x = jax.random.normal(k_x, (N, layer_config[0]), jnp.float32)

    # small synthetic graph: a ring plus a few chords (undirected)
    ring_src = jnp.arange(N, dtype=jnp.int32)
    ring_dst = (ring_src + 1) % N
    extra_src = jnp.array([0, 3, 5, 7, 11, 13], dtype=jnp.int32)
    extra_dst = jnp.array([128, 64, 200, 96, 177, 222], dtype=jnp.int32)
    src = jnp.concatenate([ring_src, ring_dst, extra_src, extra_dst])
    dst = jnp.concatenate([ring_dst, ring_src, extra_dst, extra_src])
    edge_index = jnp.stack([src, dst])          # (2, E)

    a_hat = build_norm_adj(edge_index, None, N)
    params = init_params(k_p, layer_config)

    out = encoder_forward(a_hat, x, params, layer_config)
    out = jax.block_until_ready(out)

    ref = encoder_reference(a_hat, x, params)
    ref = ref.astype(jnp.bfloat16).astype(jnp.float32)   # mirror final bf16 store
    max_err = float(jnp.max(jnp.abs(out.astype(jnp.float32) - ref)))

    assert out.shape == (N, layer_config[2])
    assert bool(jnp.all(jnp.isfinite(out)))
    # tolerance covers bf16 ULP-level reduction-order differences between the
    # tiled kernel and the monolithic reference
    assert max_err < 7.5e-2, f"max abs err vs reference: {max_err}"
    print("KERNEL_OK")
</pallas_src>

<mosaic_0001>
module attributes {stable_mosaic.version = 11 : i64} {
  func.func @gcn_layer_kernel(%arg0: i32, %arg1: i32, %arg2: memref<128x128xbf16, #tpu.memory_space<vmem>>, %arg3: memref<128x128xf32, #tpu.memory_space<vmem>>, %arg4: memref<128x128xbf16, #tpu.memory_space<vmem>>, %arg5: memref<8x128xf32, #tpu.memory_space<vmem>>, %arg6: memref<128x128xf32, #tpu.memory_space<vmem>>, %arg7: memref<8x128xf32, #tpu.memory_space<vmem>>, %arg8: memref<128x128xf32, #tpu.memory_space<vmem>>) attributes {dimension_semantics = [#tpu.dimension_semantics<parallel>, #tpu.dimension_semantics<arbitrary>], iteration_bounds = array<i64: 2, 2>, scalar_prefetch = 0 : i64, scratch_operands = 1 : i64, tpu.core_type = #tpu.core_type<tc>, window_params = [{transform_indices = @transform_0, window_bounds = array<i64: 128, 128>}, {transform_indices = @transform_1, window_bounds = array<i64: 128, 128>}, {pipeline_mode = #tpu.pipeline_mode<synchronous>, transform_indices = @transform_2, window_bounds = array<i64: 128, 128>}, {pipeline_mode = #tpu.pipeline_mode<synchronous>, transform_indices = @transform_3, window_bounds = array<i64: 8, 128>}, {transform_indices = @transform_4, window_bounds = array<i64: 128, 128>}, {transform_indices = @transform_5, window_bounds = array<i64: 8, 128>}]} {
    %c0_i32 = arith.constant 0 : i32
    %0 = arith.cmpi eq, %arg1, %c0_i32 : i32
    %1 = arith.extui %0 : i1 to i32
    %c0_i32_0 = arith.constant 0 : i32
    %2 = arith.cmpi ne, %1, %c0_i32_0 : i32
    scf.if %2 {
      %cst_12 = arith.constant 0.000000e+00 : f32
      %26 = vector.broadcast %cst_12 : f32 to vector<128x128xf32>
      %c0_13 = arith.constant 0 : index
      %c0_14 = arith.constant 0 : index
      %27 = vector.load %arg8[%c0_13, %c0_14] : memref<128x128xf32, #tpu.memory_space<vmem>>, vector<128x128xf32>
      tpu.vector_store %arg8[%c0_13, %c0_14], %26 {strides = array<i32>} : memref<128x128xf32, #tpu.memory_space<vmem>>, vector<128x128xf32>,
      %cst_15 = arith.constant 0.000000e+00 : f32
      %28 = vector.broadcast %cst_15 : f32 to vector<8x128xf32>
      %c0_16 = arith.constant 0 : index
      %c0_17 = arith.constant 0 : index
      %29 = vector.load %arg7[%c0_16, %c0_17] : memref<8x128xf32, #tpu.memory_space<vmem>>, vector<8x128xf32>
      tpu.vector_store %arg7[%c0_16, %c0_17], %28 {strides = array<i32>} : memref<8x128xf32, #tpu.memory_space<vmem>>, vector<8x128xf32>,
    } else {
    }
    %c0 = arith.constant 0 : index
    %c0_1 = arith.constant 0 : index
    %3 = vector.load %arg5[%c0, %c0_1] : memref<8x128xf32, #tpu.memory_space<vmem>>, vector<8x128xf32>
    %4 = vector.extract_strided_slice %3 {offsets = [0, 0], sizes = [1, 128], strides = [1, 1]} : vector<8x128xf32> to vector<1x128xf32>
    %5 = vector.extract_strided_slice %3 {offsets = [1, 0], sizes = [1, 128], strides = [1, 1]} : vector<8x128xf32> to vector<1x128xf32>
    %6 = vector.extract_strided_slice %3 {offsets = [2, 0], sizes = [1, 1], strides = [1, 1]} : vector<8x128xf32> to vector<1x1xf32>
    %c0_2 = arith.constant 0 : index
    %c0_3 = arith.constant 0 : index
    %7 = vector.load %arg3[%c0_2, %c0_3] : memref<128x128xf32, #tpu.memory_space<vmem>>, vector<128x128xf32>
    %8 = vector.broadcast %4 : vector<1x128xf32> to vector<128x128xf32>
    %9 = arith.mulf %7, %8 : vector<128x128xf32>
    %10 = vector.broadcast %5 : vector<1x128xf32> to vector<128x128xf32>
    %11 = arith.addf %9, %10 : vector<128x128xf32>
    %cst = arith.constant 0.000000e+00 : f32
    %12 = vector.broadcast %cst : f32 to vector<128x128xf32>
    %13 = arith.cmpf ogt, %11, %12 : vector<128x128xf32>
    %14 = vector.broadcast %6 : vector<1x1xf32> to vector<128x128xf32>
    %15 = arith.mulf %14, %11 : vector<128x128xf32>
    %16 = arith.select %13, %11, %15 : vector<128x128xi1>, vector<128x128xf32>
    %c0_4 = arith.constant 0 : index
    %c0_5 = arith.constant 0 : index
    %17 = vector.load %arg8[%c0_4, %c0_5] : memref<128x128xf32, #tpu.memory_space<vmem>>, vector<128x128xf32>
    %c0_6 = arith.constant 0 : index
    %c0_7 = arith.constant 0 : index
    %18 = vector.load %arg2[%c0_6, %c0_7] : memref<128x128xbf16, #tpu.memory_space<vmem>>, vector<128x128xbf16>
    %19 = arith.truncf %16 : vector<128x128xf32> to vector<128x128xbf16>
    %cst_8 = arith.constant dense<0.000000e+00> : vector<128x128xf32>
    %20 = tpu.matmul %18, %19, %cst_8 {dimension_numbers = #tpu.dot_dimension_numbers<[1], [0], [0], [1], [0, 0, 1, 1], [], []>} : vector<128x128xbf16>, vector<128x128xbf16>, vector<128x128xf32> -> vector<128x128xf32>
    %21 = arith.addf %17, %20 : vector<128x128xf32>
    %c0_9 = arith.constant 0 : index
    %c0_10 = arith.constant 0 : index
    %22 = vector.load %arg8[%c0_9, %c0_10] : memref<128x128xf32, #tpu.memory_space<vmem>>, vector<128x128xf32>
    tpu.vector_store %arg8[%c0_9, %c0_10], %21 {strides = array<i32>} : memref<128x128xf32, #tpu.memory_space<vmem>>, vector<128x128xf32>,
    %c1_i32 = arith.constant 1 : i32
    %23 = arith.cmpi eq, %arg1, %c1_i32 : i32
    %24 = arith.extui %23 : i1 to i32
    %c0_i32_11 = arith.constant 0 : i32
    %25 = arith.cmpi ne, %24, %c0_i32_11 : i32
    scf.if %25 {
      %c0_12 = arith.constant 0 : index
      %c0_13 = arith.constant 0 : index
      %26 = vector.load %arg8[%c0_12, %c0_13] : memref<128x128xf32, #tpu.memory_space<vmem>>, vector<128x128xf32>
      %27 = arith.truncf %26 : vector<128x128xf32> to vector<128x128xbf16>
      %c0_14 = arith.constant 0 : index
      %c0_15 = arith.constant 0 : index
      %28 = vector.load %arg4[%c0_14, %c0_15] : memref<128x128xbf16, #tpu.memory_space<vmem>>, vector<128x128xbf16>
      %cst_16 = arith.constant dense<0.000000e+00> : vector<128x128xf32>
      %29 = tpu.matmul %27, %28, %cst_16 {dimension_numbers = #tpu.dot_dimension_numbers<[1], [0], [0], [1], [0, 0, 1, 1], [], []>} : vector<128x128xbf16>, vector<128x128xbf16>, vector<128x128xf32> -> vector<128x128xf32>
      %c0_17 = arith.constant 0 : index
      %c0_18 = arith.constant 0 : index
      %30 = vector.load %arg6[%c0_17, %c0_18] : memref<128x128xf32, #tpu.memory_space<vmem>>, vector<128x128xf32>
      tpu.vector_store %arg6[%c0_17, %c0_18], %29 {strides = array<i32>} : memref<128x128xf32, #tpu.memory_space<vmem>>, vector<128x128xf32>,
      %cst_19 = arith.constant dense<0.000000e+00> : vector<128xf32>
      %31 = vector.multi_reduction <add>, %29, %cst_19 [0] : vector<128x128xf32> to vector<128xf32>
      %32 = vector.shape_cast %31 : vector<128xf32> to vector<1x128xf32>
      %c0_20 = arith.constant 0 : index
      %c0_21 = arith.constant 0 : index
      %33 = vector.load %arg7[%c0_20, %c0_21] : memref<8x128xf32, #tpu.memory_space<vmem>>, vector<1x128xf32>
      tpu.vector_store %arg7[%c0_20, %c0_21], %32 {strides = array<i32>} : memref<8x128xf32, #tpu.memory_space<vmem>>, vector<1x128xf32>,
      %34 = arith.mulf %29, %29 : vector<128x128xf32>
      %cst_22 = arith.constant dense<0.000000e+00> : vector<128xf32>
      %35 = vector.multi_reduction <add>, %34, %cst_22 [0] : vector<128x128xf32> to vector<128xf32>
      %36 = vector.shape_cast %35 : vector<128xf32> to vector<1x128xf32>
      %c1 = arith.constant 1 : index
      %c0_23 = arith.constant 0 : index
      %37 = vector.load %arg7[%c1, %c0_23] : memref<8x128xf32, #tpu.memory_space<vmem>>, vector<1x128xf32>
      tpu.vector_store %arg7[%c1, %c0_23], %36 {strides = array<i32>} : memref<8x128xf32, #tpu.memory_space<vmem>>, vector<1x128xf32>,
    } else {
    }
    return
  }
  func.func @transform_0(%arg0: i32, %arg1: i32) -> (i32, i32) {
    %c0_i32 = arith.constant 0 : i32
    return %arg0, %arg1 : i32, i32
  }
  func.func @transform_1(%arg0: i32, %arg1: i32) -> (i32, i32) {
    %c0_i32 = arith.constant 0 : i32
    %c0_i32_0 = arith.constant 0 : i32
    return %arg1, %c0_i32 : i32, i32
  }
  func.func @transform_2(%arg0: i32, %arg1: i32) -> (i32, i32) {
    %c0_i32 = arith.constant 0 : i32
    %c0_i32_0 = arith.constant 0 : i32
    %c0_i32_1 = arith.constant 0 : i32
    return %c0_i32, %c0_i32_0 : i32, i32
  }
  func.func @transform_3(%arg0: i32, %arg1: i32) -> (i32, i32) {
    %c0_i32 = arith.constant 0 : i32
    %c0_i32_0 = arith.constant 0 : i32
    %c0_i32_1 = arith.constant 0 : i32
    return %c0_i32, %c0_i32_0 : i32, i32
  }
  func.func @transform_4(%arg0: i32, %arg1: i32) -> (i32, i32) {
    %c0_i32 = arith.constant 0 : i32
    %c0_i32_0 = arith.constant 0 : i32
    return %arg0, %c0_i32 : i32, i32
  }
  func.func @transform_5(%arg0: i32, %arg1: i32) -> (i32, i32) {
    %c0_i32 = arith.constant 0 : i32
    %c0_i32_0 = arith.constant 0 : i32
    return %arg0, %c0_i32 : i32, i32
  }
}

</mosaic_0001>

<llo_original>
// kernel: tpu_custom_call.1
$region0: #{tpu_custom_call.1}
  #allocation0 [shape = 'u32[]', space=smem, size = 0x4, offset = 0x4, fixed_abs, tag = 'smem constant byte address 0x4 - core index']
  #allocation1 [shape = 'u32[144,128]{1,0:T(1,128)}', space=vmem, size = 0x12000, scoped, tag = 'internal scratch']
  #allocation2 [shape = 'f32[128,128]{1,0:T(8,128)}', space=vmem, size = 0x10000, scoped, tag = 'scratch operand']
  %s0 = inlined_call_operand.hbm [shape: bf16[256,256], index: 0, kind: input, shape index: {}]
  %s1 = inlined_call_operand.hbm [shape: f32[256,128], index: 1, kind: input, shape index: {}]
  %s2 = inlined_call_operand.hbm [shape: bf16[128,128], index: 2, kind: input, shape index: {}]
  %s3 = inlined_call_operand.hbm [shape: f32[8,128], index: 3, kind: input, shape index: {}]
  %s4 = inlined_call_operand.hbm [shape: f32[256,128], index: 4, kind: output, shape index: {0}]
  %s5 = inlined_call_operand.hbm [shape: f32[16,128], index: 5, kind: output, shape index: {1}]
  %6 = xla_tuple %s4, %s5
  %s7 = sld [smem:[#allocation0]]
  $region81: #{tpu_custom_call.1} parent=0
    _
  %s9 = ssub.s32 1, %s7
  %s10 = scalar_select 0, %s9, %s7
  $region1: #{tpu_custom_call.1} parent=0
    #allocation3 [shape = 'u8[65536]{0}', space=vmem, size = 0x10000, scoped, tag = 'input window, operand 0']
    #allocation4 [shape = 's32[2]{0}', space=sflag, size = 0x8, scoped, tag = 'scoped memory for tpu_custom_call.1']
    #allocation5 [shape = 's32[2]{0}', space=sflag, size = 0x8, scoped, tag = 'scoped memory for tpu_custom_call.1']
    #allocation6 [shape = 'u8[131072]{0}', space=vmem, size = 0x20000, scoped, tag = 'input window, operand 1']
    #allocation7 [shape = 's32[2]{0}', space=sflag, size = 0x8, scoped, tag = 'scoped memory for tpu_custom_call.1']
    #allocation8 [shape = 'u8[32768]{0}', space=vmem, size = 0x8000, scoped, tag = 'input window, operand 2, single buffered']
    #allocation9 [shape = 'u8[4096]{0}', space=vmem, size = 0x1000, scoped, tag = 'input window, operand 3, single buffered']
    #allocation10 [shape = 's32[1]{0}', space=sflag, size = 0x4, scoped, tag = 'scoped memory for tpu_custom_call.1']
    #allocation11 [shape = 'u8[131072]{0}', space=vmem, size = 0x20000, scoped, tag = 'output window, operand 0']
    #allocation12 [shape = 'u8[8192]{0}', space=vmem, size = 0x2000, scoped, tag = 'output window, operand 1']
    #allocation13 [shape = 's32[2]{0}', space=sflag, size = 0x8, scoped, tag = 'scoped memory for tpu_custom_call.1']
    %11 = vsyncpa [#allocation4], 0
    %s12 = scalar_lea.sflag [#allocation4], 1
    %13 = vsyncpa %s12, 0
    %14 = vsyncpa [#allocation7], 0
    %s15 = scalar_lea.sflag [#allocation7], 1
    %16 = vsyncpa %s15, 0
    %17 = vsyncpa [#allocation10], 0
    %18 = vsyncpa [#allocation5], 0
    %s19 = scalar_lea.sflag [#allocation5], 1
    %20 = vsyncpa %s19, 0
    %21 = vsyncpa [#allocation13], 0
    %s22 = scalar_lea.sflag [#allocation13], 1
    %23 = vsyncpa %s22, 0
    loop: start=0, step=1, limit=6
    $region2: #{tpu_custom_call.1} parent=1 // loop_pre_header
      _
    $region3: #{tpu_custom_call.1} parent=1 // loop_header
      %s25 = sphi 0, %s29
      %p26 = scmp.ge.s32.totalorder %s25, 6
      %s32 = sphi 0, %s44
      %s33 = sphi 0, %s40
      %s34 = sphi 0, %s32
      %s35 = sphi 0, %s33
      %s36 = sphi 0, %s34
      %s37 = sphi 0, %s35
      %s49 = sphi 0, %s51
      %s52 = sphi 0, %s49
      %s53 = sphi 0, %s52
      %s69 = sphi 0, %s53
      %s75 = sphi 0, %s77
      %s78 = sphi 0, %s75
      %s79 = sphi 0, %s78
      %s95 = sphi 0, %s79
      %s99 = sphi 0, %s99
      %s101 = sphi 0, %s99
      %s102 = sphi 0, %s101
      %s116 = sphi 0, %s102
      %s120 = sphi 0, %s120
      %s122 = sphi 0, %s120
      %s123 = sphi 0, %s122
      %s137 = sphi 0, %s123
      %s143 = sphi 0, %s145
      %s146 = sphi 0, %s143
      %s147 = sphi 0, %s146
      %s163 = sphi 0, %s147
      %s169 = sphi 0, %s171
      %s172 = sphi 0, %s169
      %s173 = sphi 0, %s172
      %s189 = sphi 0, %s173
    $region4: #{tpu_custom_call.1} parent=1 // loop_header_branch
      %28 = sbr.rel (%p26) target = $region8
    $region5: #{tpu_custom_call.1} parent=1 // loop_body
      %s30 = ssub.s32 %s25, 1
      %s31 = ssub.s32 %s25, 2
      %s38 = sadd.s32 1, %s33
      %p39 = scmp.ge.s32.totalorder %s38, 2
      %s40 = scalar_select %p39, 0, %s38
      %s41 = sadd.s32 1, %s32
      %s42 = scalar_select %p39, %s41, %s32
      %p43 = scmp.ge.s32.totalorder %s42, 2
      %s44 = scalar_select %p43, 0, %s42
      %s45 = ssub.s32 %s32, %s44
      %s46 = ssub.s32 %s33, %s40
      %s47 = sor.u32 %s45, %s46
      %p48 = scmp.eq.s32.totalorder %s47, 0
      %s50 = sadd.s32 %s49, 1
      %s51 = scalar_select %p48, %s49, %s50
      %p54 = pneg %p48
      %p55 = scmp.eq.s32.totalorder %s25, 3
      %p56 = por %p54, %p55
      %p57 = scmp.ne.s32.totalorder %s49, %s52
      %p58 = scmp.eq.s32.totalorder %s25, 0
      %p59 = por %p57, %p58
      %p60 = scmp.ne.s32.totalorder %s49, %s52
      %p61 = scmp.eq.s32.totalorder %s30, 3
      %p62 = por %p60, %p61
      %p63 = scmp.ne.s32.totalorder %s52, %s53
      %p64 = scmp.eq.s32.totalorder %s30, 0
      %p65 = por %p63, %p64
      %p66 = scmp.ne.s32.totalorder %s52, %s53
      %p67 = scmp.eq.s32.totalorder %s31, 3
      %p68 = por %p66, %p67
      %p70 = scmp.ne.s32.totalorder %s53, %s69
      %p71 = scmp.eq.s32.totalorder %s31, 0
      %p72 = por %p70, %p71
      %s73 = ssub.s32 %s33, %s40
      %p74 = scmp.eq.s32.totalorder %s73, 0
      %s76 = sadd.s32 %s75, 1
      %s77 = scalar_select %p74, %s75, %s76
      %p80 = pneg %p74
      %p81 = scmp.eq.s32.totalorder %s25, 3
      %p82 = por %p80, %p81
      %p83 = scmp.ne.s32.totalorder %s75, %s78
      %p84 = scmp.eq.s32.totalorder %s25, 0
      %p85 = por %p83, %p84
      %p86 = scmp.ne.s32.totalorder %s75, %s78
      %p87 = scmp.eq.s32.totalorder %s30, 3
      %p88 = por %p86, %p87
      %p89 = scmp.ne.s32.totalorder %s78, %s79
      %p90 = scmp.eq.s32.totalorder %s30, 0
      %p91 = por %p89, %p90
      %p92 = scmp.ne.s32.totalorder %s78, %s79
      %p93 = scmp.eq.s32.totalorder %s31, 3
      %p94 = por %p92, %p93
      %p96 = scmp.ne.s32.totalorder %s79, %s95
      %p97 = scmp.eq.s32.totalorder %s31, 0
      %p98 = por %p96, %p97
      %s100 = sadd.s32 %s99, 1
      %p103 = scmp.eq.s32.totalorder %s25, 3
      %p104 = scmp.ne.s32.totalorder %s99, %s101
      %p105 = scmp.eq.s32.totalorder %s25, 0
      %p106 = por %p104, %p105
      %p107 = scmp.ne.s32.totalorder %s99, %s101
      %p108 = scmp.eq.s32.totalorder %s30, 3
      %p109 = por %p107, %p108
      %p110 = scmp.ne.s32.totalorder %s101, %s102
      %p111 = scmp.eq.s32.totalorder %s30, 0
      %p112 = por %p110, %p111
      %p113 = scmp.ne.s32.totalorder %s101, %s102
      %p114 = scmp.eq.s32.totalorder %s31, 3
      %p115 = por %p113, %p114
      %p117 = scmp.ne.s32.totalorder %s102, %s116
      %p118 = scmp.eq.s32.totalorder %s31, 0
      %p119 = por %p117, %p118
      %s121 = sadd.s32 %s120, 1
      %p124 = scmp.eq.s32.totalorder %s25, 3
      %p125 = scmp.ne.s32.totalorder %s120, %s122
      %p126 = scmp.eq.s32.totalorder %s25, 0
      %p127 = por %p125, %p126
      %p128 = scmp.ne.s32.totalorder %s120, %s122
      %p129 = scmp.eq.s32.totalorder %s30, 3
      %p130 = por %p128, %p129
      %p131 = scmp.ne.s32.totalorder %s122, %s123
      %p132 = scmp.eq.s32.totalorder %s30, 0
      %p133 = por %p131, %p132
      %p134 = scmp.ne.s32.totalorder %s122, %s123
      %p135 = scmp.eq.s32.totalorder %s31, 3
      %p136 = por %p134, %p135
      %p138 = scmp.ne.s32.totalorder %s123, %s137
      %p139 = scmp.eq.s32.totalorder %s31, 0
      %p140 = por %p138, %p139
      %s141 = ssub.s32 %s32, %s44
      %p142 = scmp.eq.s32.totalorder %s141, 0
      %s144 = sadd.s32 %s143, 1
      %s145 = scalar_select %p142, %s143, %s144
      %p148 = pneg %p142
      %p149 = scmp.eq.s32.totalorder %s25, 3
      %p150 = por %p148, %p149
      %p151 = scmp.ne.s32.totalorder %s143, %s146
      %p152 = scmp.eq.s32.totalorder %s25, 0
      %p153 = por %p151, %p152
      %p154 = scmp.ne.s32.totalorder %s143, %s146
      %p155 = scmp.eq.s32.totalorder %s30, 3
      %p156 = por %p154, %p155
      %p157 = scmp.ne.s32.totalorder %s146, %s147
      %p158 = scmp.eq.s32.totalorder %s30, 0
      %p159 = por %p157, %p158
      %p160 = scmp.ne.s32.totalorder %s146, %s147
      %p161 = scmp.eq.s32.totalorder %s31, 3
      %p162 = por %p160, %p161
      %p164 = scmp.ne.s32.totalorder %s147, %s163
      %p165 = scmp.eq.s32.totalorder %s31, 0
      %p166 = por %p164, %p165
      %s167 = ssub.s32 %s32, %s44
      %p168 = scmp.eq.s32.totalorder %s167, 0
      %s170 = sadd.s32 %s169, 1
      %s171 = scalar_select %p168, %s169, %s170
      %p174 = pneg %p168
      %p175 = scmp.eq.s32.totalorder %s25, 3
      %p176 = por %p174, %p175
      %p177 = scmp.ne.s32.totalorder %s169, %s172
      %p178 = scmp.eq.s32.totalorder %s25, 0
      %p179 = por %p177, %p178
      %p180 = scmp.ne.s32.totalorder %s169, %s172
      %p181 = scmp.eq.s32.totalorder %s30, 3
      %p182 = por %p180, %p181
      %p183 = scmp.ne.s32.totalorder %s172, %s173
      %p184 = scmp.eq.s32.totalorder %s30, 0
      %p185 = por %p183, %p184
      %p186 = scmp.ne.s32.totalorder %s172, %s173
      %p187 = scmp.eq.s32.totalorder %s31, 3
      %p188 = por %p186, %p187
      %p190 = scmp.ne.s32.totalorder %s173, %s189
      %p191 = scmp.eq.s32.totalorder %s31, 0
      %p192 = por %p190, %p191
      %p193 = scmp.le.s32.totalorder 1, %s25
      %p194 = scmp.lt.s32.totalorder %s25, 5
      %p195 = pnand %p193, %p194
      %p196 = pneg %p195
      // Predicated region
      $region9: #{tpu_custom_call.1} parent=5 // pred_check
        _
      $region10: #{tpu_custom_call.1} parent=5 // pred_check_branch
        %198 = sbr.rel (%p195) target = $region12
      $region11: #{tpu_custom_call.1} parent=5 // pred_region
        %s199 = ssub.s32 %s25, 1
        // Predicated region
        $region13: #{tpu_custom_call.1} parent=11 // pred_check
          %p200 = pneg %p112
        $region14: #{tpu_custom_call.1} parent=11 // pred_check_branch
          %202 = sbr.rel (%p200) target = $region16
        $region15: #{tpu_custom_call.1} parent=11 // pred_region
          %s204 = ssub.s32 1024, 1024
          %205 = vsyncadd [#allocation7], %s204
          %s206 = sshll.u32 [#allocation8], 4
          %s207 = int_to_ptr.vmem [resolvable:$true] %s206
          %212 = dma.hbm_to_vmem [thread:$0]  %s2, 1024, %s207, [#allocation7], 64, 64, 4
        $region16: #{tpu_custom_call.1} parent=11 // pred_fallthru
          _
        // Predicated region
        $region17: #{tpu_custom_call.1} parent=11 // pred_check
          %p213 = pneg %p133
        $region18: #{tpu_custom_call.1} parent=11 // pred_check_branch
          %215 = sbr.rel (%p213) target = $region20
        $region19: #{tpu_custom_call.1} parent=11 // pred_region
          %s217 = ssub.s32 128, 128
          %218 = vsyncadd [#allocation10], %s217
          %s220 = sshll.u32 [#allocation9], 4
          %s221 = int_to_ptr.vmem [resolvable:$true] %s220
          %223 = dma.hbm_to_vmem [thread:$0]  %s3, 128, %s221, [#allocation10]
        $region20: #{tpu_custom_call.1} parent=11 // pred_fallthru
          _
      $region12: #{tpu_custom_call.1} parent=5 // pred_fallthru
        _
      %p224 = scmp.lt.s32.totalorder %s25, 4
      // Predicated region
      $region21: #{tpu_custom_call.1} parent=5 // pred_check
        %p225 = pneg %p224
      $region22: #{tpu_custom_call.1} parent=5 // pred_check_branch
        %227 = sbr.rel (%p225) target = $region24
      $region23: #{tpu_custom_call.1} parent=5 // pred_region
        // Predicated region
        $region25: #{tpu_custom_call.1} parent=23 // pred_check
          %p228 = pneg %p59
        $region26: #{tpu_custom_call.1} parent=23 // pred_check_branch
          %230 = sbr.rel (%p228) target = $region28
        $region27: #{tpu_custom_call.1} parent=23 // pred_region
          %s231 = sand.u32 %s49, 1
          %s232 = scalar_lea.sflag [#allocation4], %s231
          %s233 = sand.u32 %s49, 1
          %s234 = smul.addr %s233, 64
          %s235 = scalar_lea.vmem [#allocation3], %s234
          %s236 = smul.u32 16, %s32
          %s238 = ssub.s32 1024, 1024
          %239 = vsyncadd %s232, %s238
          %s240 = smul.addr %s236, 2
          %s241 = sadd.s32 %s33, %s240
          %s242 = smul.addr %s241, 64
          %s243 = scalar_lea.hbm %s0, %s242
          %s244 = sshll.u32 %s235, 4
          %s245 = int_to_ptr.vmem [resolvable:$true] %s244
          %250 = dma.hbm_to_vmem [thread:$0]  %s243, 1024, %s245, %s232, 128, 64, 4
        $region28: #{tpu_custom_call.1} parent=23 // pred_fallthru
          _
        // Predicated region
        $region29: #{tpu_custom_call.1} parent=23 // pred_check
          %p251 = pneg %p85
        $region30: #{tpu_custom_call.1} parent=23 // pred_check_branch
          %253 = sbr.rel (%p251) target = $region32
        $region31: #{tpu_custom_call.1} parent=23 // pred_region
          %s254 = sand.u32 %s25, 1
          %s255 = scalar_lea.sflag [#allocation7], %s254
          %s256 = sand.u32 %s75, 1
          %s257 = smul.addr %s256, 128
          %s258 = scalar_lea.vmem [#allocation6], %s257
          %s259 = smul.u32 16, %s33
          %s261 = ssub.s32 2048, 2048
          %262 = vsyncadd %s255, %s261
          %s263 = smul.addr %s259, 128
          %s264 = scalar_lea.hbm %s1, %s263
          %s265 = sshll.u32 %s258, 4
          %s266 = int_to_ptr.vmem [resolvable:$true] %s265
          %271 = dma.hbm_to_vmem [thread:$0]  %s264, 2048, %s266, %s255, 128, 128, 8
        $region32: #{tpu_custom_call.1} parent=23 // pred_fallthru
          _
      $region24: #{tpu_custom_call.1} parent=5 // pred_fallthru
        _
      %p272 = scmp.le.s32.totalorder 1, %s25
      %p273 = scmp.lt.s32.totalorder %s25, 5
      %p274 = pnand %p272, %p273
      %p275 = pneg %p274
      // Predicated region
      $region33: #{tpu_custom_call.1} parent=5 // pred_check
        _
      $region34: #{tpu_custom_call.1} parent=5 // pred_check_branch
        %277 = sbr.rel (%p274) target = $region36
      $region35: #{tpu_custom_call.1} parent=5 // pred_region
        %s278 = ssub.s32 %s25, 1
        %s279 = sand.u32 %s52, 1
        %s280 = scalar_lea.sflag [#allocation4], %s279
        %s281 = sand.u32 %s52, 1
        %s282 = smul.addr %s281, 64
        %s283 = scalar_lea.vmem [#allocation3], %s282
        // Predicated region
        $region37: #{tpu_custom_call.1} parent=35 // pred_check
          %p284 = pneg %p65
        $region38: #{tpu_custom_call.1} parent=35 // pred_check_branch
          %286 = sbr.rel (%p284) target = $region40
        $region39: #{tpu_custom_call.1} parent=35 // pred_region
          %287 = dma.done %s280, 1024
        $region40: #{tpu_custom_call.1} parent=35 // pred_fallthru
          _
        %s288 = sand.u32 %s30, 1
        %s289 = scalar_lea.sflag [#allocation7], %s288
        %s290 = sand.u32 %s78, 1
        %s291 = smul.addr %s290, 128
        %s292 = scalar_lea.vmem [#allocation6], %s291
        // Predicated region
        $region41: #{tpu_custom_call.1} parent=35 // pred_check
          %p293 = pneg %p91
        $region42: #{tpu_custom_call.1} parent=35 // pred_check_branch
          %295 = sbr.rel (%p293) target = $region44
        $region43: #{tpu_custom_call.1} parent=35 // pred_region
          %296 = dma.done %s289, 2048
        $region44: #{tpu_custom_call.1} parent=35 // pred_fallthru
          _
        // Predicated region
        $region45: #{tpu_custom_call.1} parent=35 // pred_check
          %p297 = pneg %p112
        $region46: #{tpu_custom_call.1} parent=35 // pred_check_branch
          %299 = sbr.rel (%p297) target = $region48
        $region47: #{tpu_custom_call.1} parent=35 // pred_region
          %300 = dma.done [#allocation7], 1024
        $region48: #{tpu_custom_call.1} parent=35 // pred_fallthru
          _
        // Predicated region
        $region49: #{tpu_custom_call.1} parent=35 // pred_check
          %p301 = pneg %p133
        $region50: #{tpu_custom_call.1} parent=35 // pred_check_branch
          %303 = sbr.rel (%p301) target = $region52
        $region51: #{tpu_custom_call.1} parent=35 // pred_region
          %304 = dma.done [#allocation10], 128
        $region52: #{tpu_custom_call.1} parent=35 // pred_fallthru
          _
        %s305 = sand.u32 %s52, 1
        %s306 = scalar_lea.sflag [#allocation4], %s305
        %s307 = sand.u32 %s52, 1
        %s308 = smul.addr %s307, 64
        %s309 = scalar_lea.vmem [#allocation3], %s308
        %p310 = pneg %p65
        %p311 = pneg %p62
        %s312 = sand.u32 %s30, 1
        %s313 = scalar_lea.sflag [#allocation7], %s312
        %s314 = sand.u32 %s78, 1
        %s315 = smul.addr %s314, 128
        %s316 = scalar_lea.vmem [#allocation6], %s315
        %p317 = pneg %p91
        %p318 = pneg %p88
        %p319 = pneg %p112
        %p320 = pneg %p109
        %p321 = pneg %p133
        %p322 = pneg %p130
        %p323 = pneg %p159
        %p324 = pneg %p156
        %s325 = sand.u32 %s146, 1
        %s326 = scalar_lea.sflag [#allocation5], %s325
        %s327 = sand.u32 %s146, 1
        %s328 = smul.addr %s327, 128
        %s329 = scalar_lea.vmem [#allocation11], %s328
        %p330 = pneg %p185
        %p331 = pneg %p182
        %s332 = sand.u32 %s172, 1
        %s333 = scalar_lea.sflag [#allocation13], %s332
        %s334 = sand.u32 %s172, 1
        %s335 = smul.addr %s334, 8
        %s336 = scalar_lea.vmem [#allocation12], %s335
        %s337 = smul.u32 16, %s34
        %s338 = smul.u32 16, %s35
        %s339 = smul.u32 16, %s34
        %p341 = scmp.eq.s32.totalorder %s35, 0
        // Predicated region
        $region53: #{tpu_custom_call.1} parent=35 // pred_check
          %p342 = pneg %p341
        $region54: #{tpu_custom_call.1} parent=35 // pred_check_branch
          %344 = sbr.rel (%p342) target = $region56
        $region55: #{tpu_custom_call.1} parent=35 // pred_region
          %345 = vst [vmem:[#allocation2] sm:$0xff] 0.0
          %346 = vst [vmem:[#allocation2 + $0x8] sm:$0xff] 0.0
          %347 = vst [vmem:[#allocation2 + $0x10] sm:$0xff] 0.0
          %348 = vst [vmem:[#allocation2 + $0x18] sm:$0xff] 0.0
          %349 = vst [vmem:[#allocation2 + $0x20] sm:$0xff] 0.0
          %350 = vst [vmem:[#allocation2 + $0x28] sm:$0xff] 0.0
          %351 = vst [vmem:[#allocation2 + $0x30] sm:$0xff] 0.0
          %352 = vst [vmem:[#allocation2 + $0x38] sm:$0xff] 0.0
          %353 = vst [vmem:[#allocation2 + $0x40] sm:$0xff] 0.0
          %354 = vst [vmem:[#allocation2 + $0x48] sm:$0xff] 0.0
          %355 = vst [vmem:[#allocation2 + $0x50] sm:$0xff] 0.0
          %356 = vst [vmem:[#allocation2 + $0x58] sm:$0xff] 0.0
          %357 = vst [vmem:[#allocation2 + $0x60] sm:$0xff] 0.0
          %358 = vst [vmem:[#allocation2 + $0x68] sm:$0xff] 0.0
          %359 = vst [vmem:[#allocation2 + $0x70] sm:$0xff] 0.0
          %360 = vst [vmem:[#allocation2 + $0x78] sm:$0xff] 0.0
          %361 = vst [vmem:[%s336] sm:$0xff] 0.0
        $region56: #{tpu_custom_call.1} parent=35 // pred_fallthru
          _
        %v362 = vld [vmem:[#allocation9] sm:$0xff]
        %v363 = vld [vmem:[%s292] sm:$0xff]
        %v364 = vld [vmem:[%s292 + $0x8] sm:$0xff]
        %v365 = vld [vmem:[%s292 + $0x10] sm:$0xff]
        %v366 = vld [vmem:[%s292 + $0x18] sm:$0xff]
        %v367 = vld [vmem:[%s292 + $0x20] sm:$0xff]
        %v368 = vld [vmem:[%s292 + $0x28] sm:$0xff]
        %v369 = vld [vmem:[%s292 + $0x30] sm:$0xff]
        %v370 = vld [vmem:[%s292 + $0x38] sm:$0xff]
        %v371 = vld [vmem:[%s292 + $0x40] sm:$0xff]
        %v372 = vld [vmem:[%s292 + $0x48] sm:$0xff]
        %v373 = vld [vmem:[%s292 + $0x50] sm:$0xff]
        %v374 = vld [vmem:[%s292 + $0x58] sm:$0xff]
        %v375 = vld [vmem:[%s292 + $0x60] sm:$0xff]
        %v376 = vld [vmem:[%s292 + $0x68] sm:$0xff]
        %v377 = vld [vmem:[%s292 + $0x70] sm:$0xff]
        %v378 = vld [vmem:[%s292 + $0x78] sm:$0xff]
        %v379 = vlaneseq
        %v380 = vshrl.u32 %v379, 7
        %v381 = vsub.s32 0, %v380
        %v382 = vrot.slane %v362, %v381
        %v383 = vmul.f32 %v363, %v382
        %v384 = vmul.f32 %v364, %v382
        %v385 = vmul.f32 %v365, %v382
        %v386 = vmul.f32 %v366, %v382
        %v387 = vmul.f32 %v367, %v382
        %v388 = vmul.f32 %v368, %v382
        %v389 = vmul.f32 %v369, %v382
        %v390 = vmul.f32 %v370, %v382
        %v391 = vmul.f32 %v371, %v382
        %v392 = vmul.f32 %v372, %v382
        %v393 = vmul.f32 %v373, %v382
        %v394 = vmul.f32 %v374, %v382
        %v395 = vmul.f32 %v375, %v382
        %v396 = vmul.f32 %v376, %v382
        %v397 = vmul.f32 %v377, %v382
        %v398 = vmul.f32 %v378, %v382
        %v399 = vlaneseq
        %v400 = vshrl.u32 %v399, 7
        %v401 = vsub.s32 1, %v400
        %v402 = vrot.slane %v362, %v401
        %v403 = vadd.f32 %v383, %v402
        %v404 = vadd.f32 %v384, %v402
        %v405 = vadd.f32 %v385, %v402
        %v406 = vadd.f32 %v386, %v402
        %v407 = vadd.f32 %v387, %v402
        %v408 = vadd.f32 %v388, %v402
        %v409 = vadd.f32 %v389, %v402
        %v410 = vadd.f32 %v390, %v402
        %v411 = vadd.f32 %v391, %v402
        %v412 = vadd.f32 %v392, %v402
        %v413 = vadd.f32 %v393, %v402
        %v414 = vadd.f32 %v394, %v402
        %v415 = vadd.f32 %v395, %v402
        %v416 = vadd.f32 %v396, %v402
        %v417 = vadd.f32 %v397, %v402
        %v418 = vadd.f32 %v398, %v402
        %vm419 = vcmp.gt.f32.partialorder %v403, 0.0
        %vm420 = vcmp.gt.f32.partialorder %v404, 0.0
        %vm421 = vcmp.gt.f32.partialorder %v405, 0.0
        %vm422 = vcmp.gt.f32.partialorder %v406, 0.0
        %vm423 = vcmp.gt.f32.partialorder %v407, 0.0
        %vm424 = vcmp.gt.f32.partialorder %v408, 0.0
        %vm425 = vcmp.gt.f32.partialorder %v409, 0.0
        %vm426 = vcmp.gt.f32.partialorder %v410, 0.0
        %vm427 = vcmp.gt.f32.partialorder %v411, 0.0
        %vm428 = vcmp.gt.f32.partialorder %v412, 0.0
        %vm429 = vcmp.gt.f32.partialorder %v413, 0.0
        %vm430 = vcmp.gt.f32.partialorder %v414, 0.0
        %vm431 = vcmp.gt.f32.partialorder %v415, 0.0
        %vm432 = vcmp.gt.f32.partialorder %v416, 0.0
        %vm433 = vcmp.gt.f32.partialorder %v417, 0.0
        %vm434 = vcmp.gt.f32.partialorder %v418, 0.0
        %v436 = vrot.slane %v362, 2
        %s437 = vtos %v436
        %v438 = vstv %s437
        %v440 = vmul.f32 %v438, %v403
        %v441 = vmul.f32 %v438, %v404
        %v442 = vmul.f32 %v438, %v405
        %v443 = vmul.f32 %v438, %v406
        %v444 = vmul.f32 %v438, %v407
        %v445 = vmul.f32 %v438, %v408
        %v446 = vmul.f32 %v438, %v409
        %v447 = vmul.f32 %v438, %v410
        %v448 = vmul.f32 %v438, %v411
        %v449 = vmul.f32 %v438, %v412
        %v450 = vmul.f32 %v438, %v413
        %v451 = vmul.f32 %v438, %v414
        %v452 = vmul.f32 %v438, %v415
        %v453 = vmul.f32 %v438, %v416
        %v454 = vmul.f32 %v438, %v417
        %v455 = vmul.f32 %v438, %v418
        %v456 = vsel %vm419, %v403, %v440
        %v457 = vsel %vm420, %v404, %v441
        %v458 = vsel %vm421, %v405, %v442
        %v459 = vsel %vm422, %v406, %v443
        %v460 = vsel %vm423, %v407, %v444
        %v461 = vsel %vm424, %v408, %v445
        %v462 = vsel %vm425, %v409, %v446
        %v463 = vsel %vm426, %v410, %v447
        %v464 = vsel %vm427, %v411, %v448
        %v465 = vsel %vm428, %v412, %v449
        %v466 = vsel %vm429, %v413, %v450
        %v467 = vsel %vm430, %v414, %v451
        %v468 = vsel %vm431, %v415, %v452
        %v469 = vsel %vm432, %v416, %v453
        %v470 = vsel %vm433, %v417, %v454
        %v471 = vsel %vm434, %v418, %v455
        %v472 = vld [vmem:[#allocation2] sm:$0xff]
        %v473 = vld [vmem:[#allocation2 + $0x8] sm:$0xff]
        %v474 = vld [vmem:[#allocation2 + $0x10] sm:$0xff]
        %v475 = vld [vmem:[#allocation2 + $0x18] sm:$0xff]
        %v476 = vld [vmem:[#allocation2 + $0x20] sm:$0xff]
        %v477 = vld [vmem:[#allocation2 + $0x28] sm:$0xff]
        %v478 = vld [vmem:[#allocation2 + $0x30] sm:$0xff]
        %v479 = vld [vmem:[#allocation2 + $0x38] sm:$0xff]
        %v480 = vld [vmem:[#allocation2 + $0x40] sm:$0xff]
        %v481 = vld [vmem:[#allocation2 + $0x48] sm:$0xff]
        %v482 = vld [vmem:[#allocation2 + $0x50] sm:$0xff]
        %v483 = vld [vmem:[#allocation2 + $0x58] sm:$0xff]
        %v484 = vld [vmem:[#allocation2 + $0x60] sm:$0xff]
        %v485 = vld [vmem:[#allocation2 + $0x68] sm:$0xff]
        %v486 = vld [vmem:[#allocation2 + $0x70] sm:$0xff]
        %v487 = vld [vmem:[#allocation2 + $0x78] sm:$0xff]
        %v488 = vld [vmem:[%s283] sm:$0xf]
        %v489 = vld [vmem:[%s283 + $0x4] sm:$0xf]
        %v490 = vld [vmem:[%s283 + $0x8] sm:$0xf]
        %v491 = vld [vmem:[%s283 + $0xc] sm:$0xf]
        %v492 = vld [vmem:[%s283 + $0x10] sm:$0xf]
        %v493 = vld [vmem:[%s283 + $0x14] sm:$0xf]
        %v494 = vld [vmem:[%s283 + $0x18] sm:$0xf]
        %v495 = vld [vmem:[%s283 + $0x1c] sm:$0xf]
        %v496 = vld [vmem:[%s283 + $0x20] sm:$0xf]
        %v497 = vld [vmem:[%s283 + $0x24] sm:$0xf]
        %v498 = vld [vmem:[%s283 + $0x28] sm:$0xf]
        %v499 = vld [vmem:[%s283 + $0x2c] sm:$0xf]
        %v500 = vld [vmem:[%s283 + $0x30] sm:$0xf]
        %v501 = vld [vmem:[%s283 + $0x34] sm:$0xf]
        %v502 = vld [vmem:[%s283 + $0x38] sm:$0xf]
        %v503 = vld [vmem:[%s283 + $0x3c] sm:$0xf]
        %v504 = vpack.c.bf16 %v457, %v456
        %v505 = vpack.c.bf16 %v459, %v458
        %v506 = vpack.c.bf16 %v461, %v460
        %v507 = vpack.c.bf16 %v463, %v462
        %v508 = vpack.c.bf16 %v465, %v464
        %v509 = vpack.c.bf16 %v467, %v466
        %v510 = vpack.c.bf16 %v469, %v468
        %v511 = vpack.c.bf16 %v471, %v470
        %v528 = vunpack.c.l.b16 %v488
        %v529 = vunpack.c.l.b16 %v489
        %v530 = vunpack.c.l.b16 %v490
        %v531 = vunpack.c.l.b16 %v491
        %v532 = vunpack.c.l.b16 %v492
        %v533 = vunpack.c.l.b16 %v493
        %v534 = vunpack.c.l.b16 %v494
        %v535 = vunpack.c.l.b16 %v495
        %v536 = vunpack.c.l.b16 %v496
        %v537 = vunpack.c.l.b16 %v497
        %v538 = vunpack.c.l.b16 %v498
        %v539 = vunpack.c.l.b16 %v499
        %v540 = vunpack.c.l.b16 %v500
        %v541 = vunpack.c.l.b16 %v501
        %v542 = vunpack.c.l.b16 %v502
        %v543 = vunpack.c.l.b16 %v503
        %v544 = vpack.c.b16 %v529, %v528
        %v545 = vpack.c.b16 %v531, %v530
        %v546 = vpack.c.b16 %v533, %v532
        %v547 = vpack.c.b16 %v535, %v534
        %v548 = vpack.c.b16 %v537, %v536
        %v549 = vpack.c.b16 %v539, %v538
        %v550 = vpack.c.b16 %v541, %v540
        %v551 = vpack.c.b16 %v543, %v542
        %560 = vmatprep.subr.bf16.mxu0 0
        %561 = vmatpush1.bf16.msra.mxu0 %v511
        %562 = vmatprep.subr.bf16.mxu0 0
        %563 = vmatpush1.bf16.msra.mxu0 %v510
        %564 = vmatprep.subr.bf16.mxu0 0
        %565 = vmatpush1.bf16.msra.mxu0 %v509
        %566 = vmatprep.subr.bf16.mxu0 0
        %567 = vmatpush1.bf16.msra.mxu0 %v508
        %568 = vmatprep.subr.bf16.mxu0 0
        %569 = vmatpush1.bf16.msra.mxu0 %v507
        %570 = vmatprep.subr.bf16.mxu0 0
        %571 = vmatpush1.bf16.msra.mxu0 %v506
        %572 = vmatprep.subr.bf16.mxu0 0
        %573 = vmatpush1.bf16.msra.mxu0 %v505
        %574 = vmatprep.subr.bf16.mxu0 0
        %575 = vmatpush1.bf16.msra.mxu0 %v504
        %576 = vmatprep.subr.bf16.mxu0 0
        %577 = vmatpush2.bf16.msra.mxu0 0
        %578 = vmatprep.subr.bf16.mxu0 0
        %579 = vmatpush2.bf16.msra.mxu0 0
        %580 = vmatprep.subr.bf16.mxu0 0
        %581 = vmatpush2.bf16.msra.mxu0 0
        %582 = vmatprep.subr.bf16.mxu0 0
        %583 = vmatpush2.bf16.msra.mxu0 0
        %584 = vmatprep.subr.bf16.mxu0 0
        %585 = vmatpush2.bf16.msra.mxu0 0
        %586 = vmatprep.subr.bf16.mxu0 0
        %587 = vmatpush2.bf16.msra.mxu0 0
        %588 = vmatprep.subr.bf16.mxu0 0
        %589 = vmatpush2.bf16.msra.mxu0 0
        %590 = vmatprep.subr.bf16.mxu0 0
        %591 = vmatpush2.bf16.msra.mxu0 0
        %592 = vmatprep.mubr.bf16.mxu0 0
        %593 = vmatmul.mubr.bf16.gmra.mxu0 %v544
        %v594 = vpop.f32.mrf.mxu0
        %v595 = vadd.f32 0.0, %v594
        %v596 = vpop.f32.mrf.mxu0
        %v597 = vpop.f32.mrf.mxu0
        %v598 = vadd.f32 0.0, %v597
        %v599 = vpop.f32.mrf.mxu0
        %600 = vmatprep.mubr.bf16.mxu0 0
        %601 = vmatmul.mubr.bf16.gmra.mxu0 %v545
        %v602 = vpop.f32.mrf.mxu0
        %v603 = vadd.f32 0.0, %v602
        %v604 = vpop.f32.mrf.mxu0
        %v605 = vpop.f32.mrf.mxu0
        %v606 = vadd.f32 0.0, %v605
        %v607 = vpop.f32.mrf.mxu0
        %608 = vmatprep.mubr.bf16.mxu0 0
        %609 = vmatmul.mubr.bf16.gmra.mxu0 %v546
        %v610 = vpop.f32.mrf.mxu0
        %v611 = vadd.f32 0.0, %v610
        %v612 = vpop.f32.mrf.mxu0
        %v613 = vpop.f32.mrf.mxu0
        %v614 = vadd.f32 0.0, %v613
        %v615 = vpop.f32.mrf.mxu0
        %616 = vmatprep.mubr.bf16.mxu0 0
        %617 = vmatmul.mubr.bf16.gmra.mxu0 %v547
        %v618 = vpop.f32.mrf.mxu0
        %v619 = vadd.f32 0.0, %v618
        %v620 = vpop.f32.mrf.mxu0
        %v621 = vpop.f32.mrf.mxu0
        %v622 = vadd.f32 0.0, %v621
        %v623 = vpop.f32.mrf.mxu0
        %624 = vmatprep.mubr.bf16.mxu0 0
        %625 = vmatmul.mubr.bf16.gmra.mxu0 %v548
        %v626 = vpop.f32.mrf.mxu0
        %v627 = vadd.f32 0.0, %v626
        %v628 = vpop.f32.mrf.mxu0
        %v629 = vpop.f32.mrf.mxu0
        %v630 = vadd.f32 0.0, %v629
        %v631 = vpop.f32.mrf.mxu0
        %632 = vmatprep.mubr.bf16.mxu0 0
        %633 = vmatmul.mubr.bf16.gmra.mxu0 %v549
        %v634 = vpop.f32.mrf.mxu0
        %v635 = vadd.f32 0.0, %v634
        %v636 = vpop.f32.mrf.mxu0
        %v637 = vpop.f32.mrf.mxu0
        %v638 = vadd.f32 0.0, %v637
        %v639 = vpop.f32.mrf.mxu0
        %640 = vmatprep.mubr.bf16.mxu0 0
        %641 = vmatmul.mubr.bf16.gmra.mxu0 %v550
        %v642 = vpop.f32.mrf.mxu0
        %v643 = vadd.f32 0.0, %v642
        %v644 = vpop.f32.mrf.mxu0
        %v645 = vpop.f32.mrf.mxu0
        %v646 = vadd.f32 0.0, %v645
        %v647 = vpop.f32.mrf.mxu0
        %648 = vmatprep.mubr.bf16.mxu0 0
        %649 = vmatmul.mubr.bf16.gmra.mxu0 %v551
        %v650 = vpop.f32.mrf.mxu0
        %v651 = vadd.f32 0.0, %v650
        %v652 = vpop.f32.mrf.mxu0
        %v653 = vpop.f32.mrf.mxu0
        %v654 = vadd.f32 0.0, %v653
        %v655 = vpop.f32.mrf.mxu0
        %656 = vdwg.mxu0
        %v657 = vadd.f32 %v472, %v595
        %v658 = vadd.f32 %v473, %v598
        %v659 = vadd.f32 %v474, %v603
        %v660 = vadd.f32 %v475, %v606
        %v661 = vadd.f32 %v476, %v611
        %v662 = vadd.f32 %v477, %v614
        %v663 = vadd.f32 %v478, %v619
        %v664 = vadd.f32 %v479, %v622
        %v665 = vadd.f32 %v480, %v627
        %v666 = vadd.f32 %v481, %v630
        %v667 = vadd.f32 %v482, %v635
        %v668 = vadd.f32 %v483, %v638
        %v669 = vadd.f32 %v484, %v643
        %v670 = vadd.f32 %v485, %v646
        %v671 = vadd.f32 %v486, %v651
        %v672 = vadd.f32 %v487, %v654
        %673 = vst [vmem:[#allocation2] sm:$0xff] %v657
        %674 = vst [vmem:[#allocation2 + $0x8] sm:$0xff] %v658
        %675 = vst [vmem:[#allocation2 + $0x10] sm:$0xff] %v659
        %676 = vst [vmem:[#allocation2 + $0x18] sm:$0xff] %v660
        %677 = vst [vmem:[#allocation2 + $0x20] sm:$0xff] %v661
        %678 = vst [vmem:[#allocation2 + $0x28] sm:$0xff] %v662
        %679 = vst [vmem:[#allocation2 + $0x30] sm:$0xff] %v663
        %680 = vst [vmem:[#allocation2 + $0x38] sm:$0xff] %v664
        %681 = vst [vmem:[#allocation2 + $0x40] sm:$0xff] %v665
        %682 = vst [vmem:[#allocation2 + $0x48] sm:$0xff] %v666
        %683 = vst [vmem:[#allocation2 + $0x50] sm:$0xff] %v667
        %684 = vst [vmem:[#allocation2 + $0x58] sm:$0xff] %v668
        %685 = vst [vmem:[#allocation2 + $0x60] sm:$0xff] %v669
        %686 = vst [vmem:[#allocation2 + $0x68] sm:$0xff] %v670
        %687 = vst [vmem:[#allocation2 + $0x70] sm:$0xff] %v671
        %688 = vst [vmem:[#allocation2 + $0x78] sm:$0xff] %v672
        %p689 = scmp.eq.s32.totalorder %s35, 1
        // Predicated region
        $region57: #{tpu_custom_call.1} parent=35 // pred_check
          %p690 = pneg %p689
        $region58: #{tpu_custom_call.1} parent=35 // pred_check_branch
          %692 = sbr.rel (%p690) target = $region60
        $region59: #{tpu_custom_call.1} parent=35 // pred_region
          %v693 = vld [vmem:[#allocation2] sm:$0xff]
          %v694 = vld [vmem:[#allocation2 + $0x8] sm:$0xff]
          %v695 = vld [vmem:[#allocation2 + $0x10] sm:$0xff]
          %v696 = vld [vmem:[#allocation2 + $0x18] sm:$0xff]
          %v697 = vld [vmem:[#allocation2 + $0x20] sm:$0xff]
          %v698 = vld [vmem:[#allocation2 + $0x28] sm:$0xff]
          %v699 = vld [vmem:[#allocation2 + $0x30] sm:$0xff]
          %v700 = vld [vmem:[#allocation2 + $0x38] sm:$0xff]
          %v701 = vld [vmem:[#allocation2 + $0x40] sm:$0xff]
          %v702 = vld [vmem:[#allocation2 + $0x48] sm:$0xff]
          %v703 = vld [vmem:[#allocation2 + $0x50] sm:$0xff]
          %v704 = vld [vmem:[#allocation2 + $0x58] sm:$0xff]
          %v705 = vld [vmem:[#allocation2 + $0x60] sm:$0xff]
          %v706 = vld [vmem:[#allocation2 + $0x68] sm:$0xff]
          %v707 = vld [vmem:[#allocation2 + $0x70] sm:$0xff]
          %v708 = vld [vmem:[#allocation2 + $0x78] sm:$0xff]
          %v709 = vpack.c.bf16 %v694, %v693
          %v710 = vpack.c.bf16 %v696, %v695
          %v711 = vpack.c.bf16 %v698, %v697
          %v712 = vpack.c.bf16 %v700, %v699
          %v713 = vpack.c.bf16 %v702, %v701
          %v714 = vpack.c.bf16 %v704, %v703
          %v715 = vpack.c.bf16 %v706, %v705
          %v716 = vpack.c.bf16 %v708, %v707
          %v717 = vld [vmem:[#allocation8] sm:$0xf]
          %v718 = vld [vmem:[#allocation8 + $0x4] sm:$0xf]
          %v719 = vld [vmem:[#allocation8 + $0x8] sm:$0xf]
          %v720 = vld [vmem:[#allocation8 + $0xc] sm:$0xf]
          %v721 = vld [vmem:[#allocation8 + $0x10] sm:$0xf]
          %v722 = vld [vmem:[#allocation8 + $0x14] sm:$0xf]
          %v723 = vld [vmem:[#allocation8 + $0x18] sm:$0xf]
          %v724 = vld [vmem:[#allocation8 + $0x1c] sm:$0xf]
          %v725 = vld [vmem:[#allocation8 + $0x20] sm:$0xf]
          %v726 = vld [vmem:[#allocation8 + $0x24] sm:$0xf]
          %v727 = vld [vmem:[#allocation8 + $0x28] sm:$0xf]
          %v728 = vld [vmem:[#allocation8 + $0x2c] sm:$0xf]
          %v729 = vld [vmem:[#allocation8 + $0x30] sm:$0xf]
          %v730 = vld [vmem:[#allocation8 + $0x34] sm:$0xf]
          %v731 = vld [vmem:[#allocation8 + $0x38] sm:$0xf]
          %v732 = vld [vmem:[#allocation8 + $0x3c] sm:$0xf]
          %v749 = vunpack.c.l.b16 %v717
          %v750 = vunpack.c.l.b16 %v718
          %v751 = vunpack.c.l.b16 %v719
          %v752 = vunpack.c.l.b16 %v720
          %v753 = vunpack.c.l.b16 %v721
          %v754 = vunpack.c.l.b16 %v722
          %v755 = vunpack.c.l.b16 %v723
          %v756 = vunpack.c.l.b16 %v724
          %v757 = vunpack.c.l.b16 %v725
          %v758 = vunpack.c.l.b16 %v726
          %v759 = vunpack.c.l.b16 %v727
          %v760 = vunpack.c.l.b16 %v728
          %v761 = vunpack.c.l.b16 %v729
          %v762 = vunpack.c.l.b16 %v730
          %v763 = vunpack.c.l.b16 %v731
          %v764 = vunpack.c.l.b16 %v732
          %v765 = vpack.c.b16 %v750, %v749
          %v766 = vpack.c.b16 %v752, %v751
          %v767 = vpack.c.b16 %v754, %v753
          %v768 = vpack.c.b16 %v756, %v755
          %v769 = vpack.c.b16 %v758, %v757
          %v770 = vpack.c.b16 %v760, %v759
          %v771 = vpack.c.b16 %v762, %v761
          %v772 = vpack.c.b16 %v764, %v763
          %781 = vmatprep.subr.bf16.mxu0 0
          %782 = vmatpush1.bf16.msra.mxu0 %v772
          %783 = vmatprep.subr.bf16.mxu0 0
          %784 = vmatpush1.bf16.msra.mxu0 %v771
          %785 = vmatprep.subr.bf16.mxu0 0
          %786 = vmatpush1.bf16.msra.mxu0 %v770
          %787 = vmatprep.subr.bf16.mxu0 0
          %788 = vmatpush1.bf16.msra.mxu0 %v769
          %789 = vmatprep.subr.bf16.mxu0 0
          %790 = vmatpush1.bf16.msra.mxu0 %v768
          %791 = vmatprep.subr.bf16.mxu0 0
          %792 = vmatpush1.bf16.msra.mxu0 %v767
          %793 = vmatprep.subr.bf16.mxu0 0
          %794 = vmatpush1.bf16.msra.mxu0 %v766
          %795 = vmatprep.subr.bf16.mxu0 0
          %796 = vmatpush1.bf16.msra.mxu0 %v765
          %797 = vmatprep.subr.bf16.mxu0 0
          %798 = vmatpush2.bf16.msra.mxu0 0
          %799 = vmatprep.subr.bf16.mxu0 0
          %800 = vmatpush2.bf16.msra.mxu0 0
          %801 = vmatprep.subr.bf16.mxu0 0
          %802 = vmatpush2.bf16.msra.mxu0 0
          %803 = vmatprep.subr.bf16.mxu0 0
          %804 = vmatpush2.bf16.msra.mxu0 0
          %805 = vmatprep.subr.bf16.mxu0 0
          %806 = vmatpush2.bf16.msra.mxu0 0
          %807 = vmatprep.subr.bf16.mxu0 0
          %808 = vmatpush2.bf16.msra.mxu0 0
          %809 = vmatprep.subr.bf16.mxu0 0
          %810 = vmatpush2.bf16.msra.mxu0 0
          %811 = vmatprep.subr.bf16.mxu0 0
          %812 = vmatpush2.bf16.msra.mxu0 0
          %813 = vmatprep.mubr.bf16.mxu0 0
          %814 = vmatmul.mubr.bf16.gmra.mxu0 %v709
          %v815 = vpop.f32.mrf.mxu0
          %v816 = vadd.f32 0.0, %v815
          %v817 = vpop.f32.mrf.mxu0
          %v818 = vpop.f32.mrf.mxu0
          %v819 = vadd.f32 0.0, %v818
          %v820 = vpop.f32.mrf.mxu0
          %821 = vmatprep.mubr.bf16.mxu0 0
          %822 = vmatmul.mubr.bf16.gmra.mxu0 %v710
          %v823 = vpop.f32.mrf.mxu0
          %v824 = vadd.f32 0.0, %v823
          %v825 = vpop.f32.mrf.mxu0
          %v826 = vpop.f32.mrf.mxu0
          %v827 = vadd.f32 0.0, %v826
          %v828 = vpop.f32.mrf.mxu0
          %829 = vmatprep.mubr.bf16.mxu0 0
          %830 = vmatmul.mubr.bf16.gmra.mxu0 %v711
          %v831 = vpop.f32.mrf.mxu0
          %v832 = vadd.f32 0.0, %v831
          %v833 = vpop.f32.mrf.mxu0
          %v834 = vpop.f32.mrf.mxu0
          %v835 = vadd.f32 0.0, %v834
          %v836 = vpop.f32.mrf.mxu0
          %837 = vmatprep.mubr.bf16.mxu0 0
          %838 = vmatmul.mubr.bf16.gmra.mxu0 %v712
          %v839 = vpop.f32.mrf.mxu0
          %v840 = vadd.f32 0.0, %v839
          %v841 = vpop.f32.mrf.mxu0
          %v842 = vpop.f32.mrf.mxu0
          %v843 = vadd.f32 0.0, %v842
          %v844 = vpop.f32.mrf.mxu0
          %845 = vmatprep.mubr.bf16.mxu0 0
          %846 = vmatmul.mubr.bf16.gmra.mxu0 %v713
          %v847 = vpop.f32.mrf.mxu0
          %v848 = vadd.f32 0.0, %v847
          %v849 = vpop.f32.mrf.mxu0
          %v850 = vpop.f32.mrf.mxu0
          %v851 = vadd.f32 0.0, %v850
          %v852 = vpop.f32.mrf.mxu0
          %853 = vmatprep.mubr.bf16.mxu0 0
          %854 = vmatmul.mubr.bf16.gmra.mxu0 %v714
          %v855 = vpop.f32.mrf.mxu0
          %v856 = vadd.f32 0.0, %v855
          %v857 = vpop.f32.mrf.mxu0
          %v858 = vpop.f32.mrf.mxu0
          %v859 = vadd.f32 0.0, %v858
          %v860 = vpop.f32.mrf.mxu0
          %861 = vmatprep.mubr.bf16.mxu0 0
          %862 = vmatmul.mubr.bf16.gmra.mxu0 %v715
          %v863 = vpop.f32.mrf.mxu0
          %v864 = vadd.f32 0.0, %v863
          %v865 = vpop.f32.mrf.mxu0
          %v866 = vpop.f32.mrf.mxu0
          %v867 = vadd.f32 0.0, %v866
          %v868 = vpop.f32.mrf.mxu0
          %869 = vmatprep.mubr.bf16.mxu0 0
          %870 = vmatmul.mubr.bf16.gmra.mxu0 %v716
          %v871 = vpop.f32.mrf.mxu0
          %v872 = vadd.f32 0.0, %v871
          %v873 = vpop.f32.mrf.mxu0
          %v874 = vpop.f32.mrf.mxu0
          %v875 = vadd.f32 0.0, %v874
          %v876 = vpop.f32.mrf.mxu0
          %877 = vdwg.mxu0
          %878 = vst [vmem:[%s329] sm:$0xff] %v816
          %879 = vst [vmem:[%s329 + $0x8] sm:$0xff] %v819
          %880 = vst [vmem:[%s329 + $0x10] sm:$0xff] %v824
          %881 = vst [vmem:[%s329 + $0x18] sm:$0xff] %v827
          %882 = vst [vmem:[%s329 + $0x20] sm:$0xff] %v832
          %883 = vst [vmem:[%s329 + $0x28] sm:$0xff] %v835
          %884 = vst [vmem:[%s329 + $0x30] sm:$0xff] %v840
          %885 = vst [vmem:[%s329 + $0x38] sm:$0xff] %v843
          %886 = vst [vmem:[%s329 + $0x40] sm:$0xff] %v848
          %887 = vst [vmem:[%s329 + $0x48] sm:$0xff] %v851
          %888 = vst [vmem:[%s329 + $0x50] sm:$0xff] %v856
          %889 = vst [vmem:[%s329 + $0x58] sm:$0xff] %v859
          %890 = vst [vmem:[%s329 + $0x60] sm:$0xff] %v864
          %891 = vst [vmem:[%s329 + $0x68] sm:$0xff] %v867
          %892 = vst [vmem:[%s329 + $0x70] sm:$0xff] %v872
          %893 = vst [vmem:[%s329 + $0x78] sm:$0xff] %v875
          %v894 = vadd.f32 %v816, %v819
          %v895 = vadd.f32 %v894, %v824
          %v896 = vadd.f32 %v895, %v827
          %v897 = vadd.f32 %v896, %v832
          %v898 = vadd.f32 %v897, %v835
          %v899 = vadd.f32 %v898, %v840
          %v900 = vadd.f32 %v899, %v843
          %v901 = vadd.f32 %v900, %v848
          %v902 = vadd.f32 %v901, %v851
          %v903 = vadd.f32 %v902, %v856
          %v904 = vadd.f32 %v903, %v859
          %v905 = vadd.f32 %v904, %v864
          %v906 = vadd.f32 %v905, %v867
          %v907 = vadd.f32 %v906, %v872
          %v908 = vadd.f32 %v907, %v875
          %v909 = vrot.slane %v908, 4
          %v910 = vadd.f32 %v908, %v909
          %v911 = vrot.slane %v910, 2
          %v912 = vadd.f32 %v910, %v911
          %v913 = vrot.slane %v912, 1
          %v914 = vadd.f32 %v912, %v913
          %915 = vst [vmem:[%s336] sm:$0x1] %v914
          %v916 = vmul.f32 %v816, %v816
          %v917 = vmul.f32 %v819, %v819
          %v918 = vmul.f32 %v824, %v824
          %v919 = vmul.f32 %v827, %v827
          %v920 = vmul.f32 %v832, %v832
          %v921 = vmul.f32 %v835, %v835
          %v922 = vmul.f32 %v840, %v840
          %v923 = vmul.f32 %v843, %v843
          %v924 = vmul.f32 %v848, %v848
          %v925 = vmul.f32 %v851, %v851
          %v926 = vmul.f32 %v856, %v856
          %v927 = vmul.f32 %v859, %v859
          %v928 = vmul.f32 %v864, %v864
          %v929 = vmul.f32 %v867, %v867
          %v930 = vmul.f32 %v872, %v872
          %v931 = vmul.f32 %v875, %v875
          %v932 = vadd.f32 %v916, %v917
          %v933 = vadd.f32 %v932, %v918
          %v934 = vadd.f32 %v933, %v919
          %v935 = vadd.f32 %v934, %v920
          %v936 = vadd.f32 %v935, %v921
          %v937 = vadd.f32 %v936, %v922
          %v938 = vadd.f32 %v937, %v923
          %v939 = vadd.f32 %v938, %v924
          %v940 = vadd.f32 %v939, %v925
          %v941 = vadd.f32 %v940, %v926
          %v942 = vadd.f32 %v941, %v927
          %v943 = vadd.f32 %v942, %v928
          %v944 = vadd.f32 %v943, %v929
          %v945 = vadd.f32 %v944, %v930
          %v946 = vadd.f32 %v945, %v931
          %v947 = vrot.slane %v946, 4
          %v948 = vadd.f32 %v946, %v947
          %v949 = vrot.slane %v948, 2
          %v950 = vadd.f32 %v948, %v949
          %v951 = vrot.slane %v950, 1
          %v952 = vadd.f32 %v950, %v951
          %953 = vst [vmem:[%s336 + $0x1] sm:$0x1] %v952
        $region60: #{tpu_custom_call.1} parent=35 // pred_fallthru
          _
        %s954 = sand.u32 %s146, 1
        %s955 = scalar_lea.sflag [#allocation5], %s954
        %s956 = sand.u32 %s146, 1
        %s957 = smul.addr %s956, 128
        %s958 = scalar_lea.vmem [#allocation11], %s957
        %s959 = sand.u32 %s172, 1
        %s960 = scalar_lea.sflag [#allocation13], %s959
        %s961 = sand.u32 %s172, 1
        %s962 = smul.addr %s961, 8
        %s963 = scalar_lea.vmem [#allocation12], %s962
        // Predicated region
        $region61: #{tpu_custom_call.1} parent=35 // pred_check
          %p964 = pneg %p156
        $region62: #{tpu_custom_call.1} parent=35 // pred_check_branch
          %966 = sbr.rel (%p964) target = $region64
        $region63: #{tpu_custom_call.1} parent=35 // pred_region
          %s967 = smul.u32 16, %s34
          %s969 = ssub.s32 2048, 2048
          %970 = vsyncadd %s955, %s969
          %s971 = smul.addr %s967, 128
          %s972 = scalar_lea.hbm %s4, %s971
          %s973 = sshll.u32 %s958, 4
          %s974 = int_to_ptr.vmem [resolvable:$true] %s973
          %979 = dma.vmem_to_hbm [thread:$0]  %s974, 2048, %s972, %s955, 128, 128, 8
        $region64: #{tpu_custom_call.1} parent=35 // pred_fallthru
          _
        // Predicated region
        $region65: #{tpu_custom_call.1} parent=35 // pred_check
          %p980 = pneg %p182
        $region66: #{tpu_custom_call.1} parent=35 // pred_check_branch
          %982 = sbr.rel (%p980) target = $region68
        $region67: #{tpu_custom_call.1} parent=35 // pred_region
          %s984 = ssub.s32 128, 128
          %985 = vsyncadd %s960, %s984
          %s986 = smul.addr %s34, 128
          %s987 = scalar_lea.hbm %s5, %s986
          %s989 = sshll.u32 %s963, 4
          %s990 = int_to_ptr.vmem [resolvable:$true] %s989
          %992 = dma.vmem_to_hbm [thread:$0]  %s990, 128, %s987, %s960
        $region68: #{tpu_custom_call.1} parent=35 // pred_fallthru
          _
      $region36: #{tpu_custom_call.1} parent=5 // pred_fallthru
        _
      %p993 = scmp.le.s32.totalorder 2, %s25
      // Predicated region
      $region69: #{tpu_custom_call.1} parent=5 // pred_check
        %p994 = pneg %p993
      $region70: #{tpu_custom_call.1} parent=5 // pred_check_branch
        %996 = sbr.rel (%p994) target = $region72
      $region71: #{tpu_custom_call.1} parent=5 // pred_region
        %s997 = ssub.s32 %s25, 2
        // Predicated region
        $region73: #{tpu_custom_call.1} parent=71 // pred_check
          %p998 = pneg %p162
        $region74: #{tpu_custom_call.1} parent=71 // pred_check_branch
          %1000 = sbr.rel (%p998) target = $region76
        $region75: #{tpu_custom_call.1} parent=71 // pred_region
          %s1001 = sand.u32 %s147, 1
          %s1002 = scalar_lea.sflag [#allocation5], %s1001
          %s1003 = sand.u32 %s147, 1
          %s1004 = smul.addr %s1003, 128
          %s1005 = scalar_lea.vmem [#allocation11], %s1004
          %1006 = dma.done %s1002, 2048
        $region76: #{tpu_custom_call.1} parent=71 // pred_fallthru
          _
        // Predicated region
        $region77: #{tpu_custom_call.1} parent=71 // pred_check
          %p1007 = pneg %p188
        $region78: #{tpu_custom_call.1} parent=71 // pred_check_branch
          %1009 = sbr.rel (%p1007) target = $region80
        $region79: #{tpu_custom_call.1} parent=71 // pred_region
          %s1010 = sand.u32 %s173, 1
          %s1011 = scalar_lea.sflag [#allocation13], %s1010
          %s1012 = sand.u32 %s173, 1
          %s1013 = smul.addr %s1012, 8
          %s1014 = scalar_lea.vmem [#allocation12], %s1013
          %1015 = dma.done %s1011, 128
        $region80: #{tpu_custom_call.1} parent=71 // pred_fallthru
          _
      $region72: #{tpu_custom_call.1} parent=5 // pred_fallthru
        _
    $region6: #{tpu_custom_call.1} parent=1 // loop_footer
      %s29 = sadd.s32 1, %s25
    $region7: #{tpu_custom_call.1} parent=1 // loop_footer_branch
      %24 = sbr.rel target = $region3
    $region8: #{tpu_custom_call.1} parent=1 // loop_exit
      _
    %1016 = vsyncpa [#allocation4], 1
    %s1017 = scalar_lea.sflag [#allocation4], 1
    %1018 = vsyncpa %s1017, 1
    %1019 = vsyncpa [#allocation7], 1
    %s1020 = scalar_lea.sflag [#allocation7], 1
    %1021 = vsyncpa %s1020, 1
    %1022 = vsyncpa [#allocation10], 1
    %1023 = vsyncpa [#allocation5], 1
    %s1024 = scalar_lea.sflag [#allocation5], 1
    %1025 = vsyncpa %s1024, 1
    %1026 = vsyncpa [#allocation13], 1
    %s1027 = scalar_lea.sflag [#allocation13], 1
    %1028 = vsyncpa %s1027, 1

</llo_original>
